<compile_context>
chip_gen: v7x
topology: tpu7x:2x2x1
jax: 0.10.0
libtpu: 0.0.40
codegen_flags: <defaults>
</compile_context>

<pallas_src>
import functools

import jax
import jax.numpy as jnp
from jax.experimental import pallas as pl
from jax.experimental.pallas import tpu as pltpu


_LANE = 128     # vocab / hidden dims padded to a multiple of this (lane-dense)
_SUBLANE = 8    # batch padded to a multiple of this (sublane-full)


def _round_up(x, m):
    return (x + m - 1) // m * m


# ----------------------------- Pallas kernel ------------------------------ #
def _embed_kernel(ids_ref, fused_ref, o_ref):
    """Fused token-lookup -> mean-pool -> projection for one batch tile.

    ids_ref   : (TB, S)   int32    token ids for this batch tile
    fused_ref : (Vp, Hp)  bf16/f32 pre-fused (table @ proj_w), grid-resident
    o_ref     : (TB, Hp)  float32  pooled + projected output tile
    """
    ids = ids_ref[...]                                     # (TB, S) int32
    TB, S = ids.shape
    Vp = fused_ref.shape[0]

    # One-hot "gather": counts[b, v] = #occurrences of token v in row b.
    # Small static unroll over S; everything stays 2-D and lane-dense (Vp%128==0).
    iota_v = jax.lax.broadcasted_iota(jnp.int32, (TB, Vp), 1)
    counts = jnp.zeros((TB, Vp), jnp.float32)
    for s in range(S):                                     # S is small & static
        counts = counts + (ids[:, s:s + 1] == iota_v).astype(jnp.float32)

    # Mean-pool scale folded into counts (exact in bf16 for power-of-two S).
    counts = counts * jnp.float32(1.0 / S)

    # Single MXU matmul: (TB, Vp) @ (Vp, Hp), bf16 operands, f32 accumulate.
    o_ref[...] = jnp.dot(counts.astype(fused_ref.dtype), fused_ref[...],
                         preferred_element_type=jnp.float32)


@functools.partial(jax.jit, static_argnames=("out_dim", "block_b"))
def pallas_embed(token_ids, fused, out_dim, *, block_b=256):
    """(mean_s one_hot(token_ids)) @ fused, fused in one Pallas kernel.

    token_ids : (B, S)   int32
    fused     : (Vp, Hp) bf16/f32  pre-fused, pre-padded (table @ proj_w)
    out_dim   : int                valid hidden width H (<= Hp)
    returns   : (B, out_dim) float32
    """
    B, S = token_ids.shape
    Vp, Hp = fused.shape

    # Big batch tile (fills MXU rows, amortizes ~0.35us/step overhead) but
    # clamped to the padded batch so tiny batches do no extra padded work.
    TB = max(_SUBLANE, min(_round_up(block_b, _SUBLANE), _round_up(B, _SUBLANE)))
    Bp = _round_up(B, TB)

    ids_p = jnp.zeros((Bp, S), jnp.int32).at[:B, :].set(token_ids.astype(jnp.int32))

    grid = (Bp // TB,)
    bytes_fused = Vp * Hp * fused.dtype.itemsize
    out = pl.pallas_call(
        _embed_kernel,
        out_shape=jax.ShapeDtypeStruct((Bp, Hp), jnp.float32),
        grid_spec=pltpu.PrefetchScalarGridSpec(
            num_scalar_prefetch=0,
            grid=grid,
            in_specs=[
                pl.BlockSpec((TB, S), lambda i: (i, 0)),    # per-tile token ids
                pl.BlockSpec((Vp, Hp), lambda i: (0, 0)),   # resident fused table
            ],
            out_specs=pl.BlockSpec((TB, Hp), lambda i: (i, 0)),
        ),
        compiler_params=pltpu.CompilerParams(
            dimension_semantics=("parallel",),              # megacore on v7x
        ),
        cost_estimate=pl.CostEstimate(
            flops=2 * Bp * Vp * Hp,
            transcendentals=0,
            bytes_accessed=Bp * S * 4 + bytes_fused + Bp * Hp * 4,
        ),
    )(ids_p, fused)
    return out[:B, :out_dim]


# --------------------------- BaseModel (JAX) ------------------------------- #
def _prep_fused(table, proj_w, dtype):
    """Host-side one-time prep: fuse table @ W, pad to lane-dense, cast."""
    V, D = table.shape
    H = proj_w.shape[1]
    fused = jnp.dot(table.astype(jnp.float32), proj_w.astype(jnp.float32))  # (V, H)
    Vp = _round_up(V, _LANE)
    Hp = _round_up(H, _LANE)
    out = jnp.zeros((Vp, Hp), jnp.float32).at[:V, :H].set(fused)
    return out.astype(dtype)


class SyntheticEmbedder:
    """Deterministic stand-in for the external `embedder` object."""

    def __init__(self, vocab=64, dim=32, hidden=32, key=None,
                 param_dtype=jnp.bfloat16):
        key = jax.random.PRNGKey(0) if key is None else key
        k1, k2, k3 = jax.random.split(key, 3)
        # Separate token tables for code vs. natural language, shared projection.
        self.code_table = jax.random.normal(k1, (vocab, dim), jnp.float32) * 0.02
        self.nl_table = jax.random.normal(k2, (vocab, dim), jnp.float32) * 0.02
        self.proj_w = jax.random.normal(k3, (dim, hidden), jnp.float32) * 0.05
        self.hidden = hidden
        # One-time constant preparation (fuse, pad, cast) — hoisted out of the
        # per-call path per the perf review.
        self.code_fused = _prep_fused(self.code_table, self.proj_w, param_dtype)
        self.nl_fused = _prep_fused(self.nl_table, self.proj_w, param_dtype)

    def embed_snippets(self, snippet_token_ids):
        return pallas_embed(snippet_token_ids, self.code_fused, self.hidden)

    def embed_queries(self, query_token_ids):
        return pallas_embed(query_token_ids, self.nl_fused, self.hidden)


class BaseModel:
    def __init__(self, embedder):
        self.embedder = embedder

    def forward(self, code_inputs=None, nl_inputs=None):
        if code_inputs is not None:
            if len(code_inputs) == 0:
                return None
            embeddings = self.embedder.embed_snippets(code_inputs)
            if embeddings is None:
                return None
            return embeddings.astype(jnp.float32)
        elif nl_inputs is not None:
            if len(nl_inputs) == 0:
                return None
            embeddings = self.embedder.embed_queries(nl_inputs)
            if embeddings is None:
                return None
            return embeddings.astype(jnp.float32)
        return None

    __call__ = forward


# --------------------------------- main ------------------------------------ #
if __name__ == "__main__":
    B, S, V, D, H = 2, 8, 64, 32, 32
    key = jax.random.PRNGKey(0)
    k_code, k_nl, k_params = jax.random.split(key, 3)

    code_ids = jax.random.randint(k_code, (B, S), 0, V, dtype=jnp.int32)
    nl_ids = jax.random.randint(k_nl, (B, S), 0, V, dtype=jnp.int32)

    model = BaseModel(SyntheticEmbedder(vocab=V, dim=D, hidden=H, key=k_params))

    code_vec = model(code_inputs=code_ids)
    nl_vec = model(nl_inputs=nl_ids)
    none_out = model()  # neither input -> None, as in the torch module

    jax.block_until_ready(code_vec)
    jax.block_until_ready(nl_vec)

    # Reference check in plain JAX (gather -> mean-pool -> project, f32).
    ref_code = (jnp.mean(jnp.take(model.embedder.code_table, code_ids, axis=0), axis=1)
                @ model.embedder.proj_w)
    ref_nl = (jnp.mean(jnp.take(model.embedder.nl_table, nl_ids, axis=0), axis=1)
              @ model.embedder.proj_w)

    assert code_vec.shape == (B, H) and code_vec.dtype == jnp.float32
    assert nl_vec.shape == (B, H) and nl_vec.dtype == jnp.float32
    assert none_out is None
    # Tolerance accounts for bf16 rounding of the host-fused (table @ W) operand.
    assert jnp.allclose(code_vec, ref_code, atol=3e-4)
    assert jnp.allclose(nl_vec, ref_nl, atol=3e-4)

    print("KERNEL_OK")
</pallas_src>

<mosaic_0001>
module attributes {stable_mosaic.version = 11 : i64} {
  func.func @_embed_kernel(%arg0: i32, %arg1: memref<8x8xi32, #tpu.memory_space<vmem>>, %arg2: memref<128x128xbf16, #tpu.memory_space<vmem>>, %arg3: memref<8x128xf32, #tpu.memory_space<vmem>>) attributes {dimension_semantics = [#tpu.dimension_semantics<parallel>], iteration_bounds = array<i64: 1>, scalar_prefetch = 0 : i64, scratch_operands = 0 : i64, tpu.core_type = #tpu.core_type<tc>, window_params = [{transform_indices = @transform_0, window_bounds = array<i64: 8, 8>}, {pipeline_mode = #tpu.pipeline_mode<synchronous>, transform_indices = @transform_1, window_bounds = array<i64: 128, 128>}, {transform_indices = @transform_2, window_bounds = array<i64: 8, 128>}]} {
    %c0 = arith.constant 0 : index
    %c0_0 = arith.constant 0 : index
    %0 = vector.load %arg1[%c0, %c0_0] : memref<8x8xi32, #tpu.memory_space<vmem>>, vector<8x8xi32>
    %1 = tpu.iota {dimensions = array<i32: 1>} : vector<8x128xi32>
    %cst = arith.constant 0.000000e+00 : f32
    %2 = vector.broadcast %cst : f32 to vector<8x128xf32>
    %3 = vector.extract_strided_slice %0 {offsets = [0, 0], sizes = [8, 1], strides = [1, 1]} : vector<8x8xi32> to vector<8x1xi32>
    %4 = vector.broadcast %3 : vector<8x1xi32> to vector<8x128xi32>
    %5 = arith.cmpi eq, %4, %1 : vector<8x128xi32>
    %6 = arith.extui %5 : vector<8x128xi1> to vector<8x128xi32>
    %7 = arith.sitofp %6 : vector<8x128xi32> to vector<8x128xf32>
    %8 = arith.addf %2, %7 : vector<8x128xf32>
    %9 = vector.extract_strided_slice %0 {offsets = [0, 1], sizes = [8, 1], strides = [1, 1]} : vector<8x8xi32> to vector<8x1xi32>
    %10 = vector.broadcast %9 : vector<8x1xi32> to vector<8x128xi32>
    %11 = arith.cmpi eq, %10, %1 : vector<8x128xi32>
    %12 = arith.extui %11 : vector<8x128xi1> to vector<8x128xi32>
    %13 = arith.sitofp %12 : vector<8x128xi32> to vector<8x128xf32>
    %14 = arith.addf %8, %13 : vector<8x128xf32>
    %15 = vector.extract_strided_slice %0 {offsets = [0, 2], sizes = [8, 1], strides = [1, 1]} : vector<8x8xi32> to vector<8x1xi32>
    %16 = vector.broadcast %15 : vector<8x1xi32> to vector<8x128xi32>
    %17 = arith.cmpi eq, %16, %1 : vector<8x128xi32>
    %18 = arith.extui %17 : vector<8x128xi1> to vector<8x128xi32>
    %19 = arith.sitofp %18 : vector<8x128xi32> to vector<8x128xf32>
    %20 = arith.addf %14, %19 : vector<8x128xf32>
    %21 = vector.extract_strided_slice %0 {offsets = [0, 3], sizes = [8, 1], strides = [1, 1]} : vector<8x8xi32> to vector<8x1xi32>
    %22 = vector.broadcast %21 : vector<8x1xi32> to vector<8x128xi32>
    %23 = arith.cmpi eq, %22, %1 : vector<8x128xi32>
    %24 = arith.extui %23 : vector<8x128xi1> to vector<8x128xi32>
    %25 = arith.sitofp %24 : vector<8x128xi32> to vector<8x128xf32>
    %26 = arith.addf %20, %25 : vector<8x128xf32>
    %27 = vector.extract_strided_slice %0 {offsets = [0, 4], sizes = [8, 1], strides = [1, 1]} : vector<8x8xi32> to vector<8x1xi32>
    %28 = vector.broadcast %27 : vector<8x1xi32> to vector<8x128xi32>
    %29 = arith.cmpi eq, %28, %1 : vector<8x128xi32>
    %30 = arith.extui %29 : vector<8x128xi1> to vector<8x128xi32>
    %31 = arith.sitofp %30 : vector<8x128xi32> to vector<8x128xf32>
    %32 = arith.addf %26, %31 : vector<8x128xf32>
    %33 = vector.extract_strided_slice %0 {offsets = [0, 5], sizes = [8, 1], strides = [1, 1]} : vector<8x8xi32> to vector<8x1xi32>
    %34 = vector.broadcast %33 : vector<8x1xi32> to vector<8x128xi32>
    %35 = arith.cmpi eq, %34, %1 : vector<8x128xi32>
    %36 = arith.extui %35 : vector<8x128xi1> to vector<8x128xi32>
    %37 = arith.sitofp %36 : vector<8x128xi32> to vector<8x128xf32>
    %38 = arith.addf %32, %37 : vector<8x128xf32>
    %39 = vector.extract_strided_slice %0 {offsets = [0, 6], sizes = [8, 1], strides = [1, 1]} : vector<8x8xi32> to vector<8x1xi32>
    %40 = vector.broadcast %39 : vector<8x1xi32> to vector<8x128xi32>
    %41 = arith.cmpi eq, %40, %1 : vector<8x128xi32>
    %42 = arith.extui %41 : vector<8x128xi1> to vector<8x128xi32>
    %43 = arith.sitofp %42 : vector<8x128xi32> to vector<8x128xf32>
    %44 = arith.addf %38, %43 : vector<8x128xf32>
    %45 = vector.extract_strided_slice %0 {offsets = [0, 7], sizes = [8, 1], strides = [1, 1]} : vector<8x8xi32> to vector<8x1xi32>
    %46 = vector.broadcast %45 : vector<8x1xi32> to vector<8x128xi32>
    %47 = arith.cmpi eq, %46, %1 : vector<8x128xi32>
    %48 = arith.extui %47 : vector<8x128xi1> to vector<8x128xi32>
    %49 = arith.sitofp %48 : vector<8x128xi32> to vector<8x128xf32>
    %50 = arith.addf %44, %49 : vector<8x128xf32>
    %cst_1 = arith.constant 1.250000e-01 : f32
    %51 = vector.broadcast %cst_1 : f32 to vector<8x128xf32>
    %52 = arith.mulf %50, %51 : vector<8x128xf32>
    %53 = arith.truncf %52 : vector<8x128xf32> to vector<8x128xbf16>
    %c0_2 = arith.constant 0 : index
    %c0_3 = arith.constant 0 : index
    %54 = vector.load %arg2[%c0_2, %c0_3] : memref<128x128xbf16, #tpu.memory_space<vmem>>, vector<128x128xbf16>
    %cst_4 = arith.constant dense<0.000000e+00> : vector<8x128xf32>
    %55 = tpu.matmul %53, %54, %cst_4 {dimension_numbers = #tpu.dot_dimension_numbers<[1], [0], [0], [1], [0, 0, 1, 1], [], []>} : vector<8x128xbf16>, vector<128x128xbf16>, vector<8x128xf32> -> vector<8x128xf32>
    %c0_5 = arith.constant 0 : index
    %c0_6 = arith.constant 0 : index
    %56 = vector.load %arg3[%c0_5, %c0_6] : memref<8x128xf32, #tpu.memory_space<vmem>>, vector<8x128xf32>
    tpu.vector_store %arg3[%c0_5, %c0_6], %55 {strides = array<i32>} : memref<8x128xf32, #tpu.memory_space<vmem>>, vector<8x128xf32>,
    return
  }
  func.func @transform_0(%arg0: i32) -> (i32, i32) {
    %c0_i32 = arith.constant 0 : i32
    %c0_i32_0 = arith.constant 0 : i32
    return %arg0, %c0_i32 : i32, i32
  }
  func.func @transform_1(%arg0: i32) -> (i32, i32) {
    %c0_i32 = arith.constant 0 : i32
    %c0_i32_0 = arith.constant 0 : i32
    %c0_i32_1 = arith.constant 0 : i32
    return %c0_i32, %c0_i32_0 : i32, i32
  }
  func.func @transform_2(%arg0: i32) -> (i32, i32) {
    %c0_i32 = arith.constant 0 : i32
    %c0_i32_0 = arith.constant 0 : i32
    return %arg0, %c0_i32 : i32, i32
  }
}

</mosaic_0001>

<llo_original>
// kernel: pallas_embed.1
$region0: #{pallas_embed.1}
  #allocation0 [shape = 'u32[]', space=smem, size = 0x4, offset = 0x4, fixed_abs, tag = 'smem constant byte address 0x4 - core index']
  #allocation1 [shape = 'u32[144,128]{1,0:T(1,128)}', space=vmem, size = 0x12000, scoped, tag = 'internal scratch']
  %s0 = inlined_call_operand.vmem [shape: s32[8,8], index: 0, kind: input, shape index: {}]
  %s1 = inlined_call_operand.hbm [shape: bf16[128,128], index: 1, kind: input, shape index: {}]
  %s2 = inlined_call_operand.vmem [shape: f32[8,128], index: 2, kind: output, shape index: {}]
  %s3 = sld [smem:[#allocation0]]
  $region22: #{pallas_embed.1} parent=0
    _
  %s5 = ssub.s32 1, %s3
  %s6 = scalar_select 0, %s5, %s3
  $region1: #{pallas_embed.1} parent=0
    #allocation2 [shape = 'u8[32768]{0}', space=vmem, size = 0x8000, scoped, tag = 'input window, operand 1, single buffered']
    #allocation3 [shape = 's32[1]{0}', space=sflag, size = 0x4, scoped, tag = 'scoped memory for pallas_embed.1']
    %7 = vsyncpa [#allocation3], 0
    // Predicated region
    $region2: #{pallas_embed.1} parent=1 // pred_check
      _
    $region3: #{pallas_embed.1} parent=1 // pred_check_branch
      %9 = sbr.rel (0) target = $region5
    $region4: #{pallas_embed.1} parent=1 // pred_region
      _
    $region5: #{pallas_embed.1} parent=1 // pred_fallthru
      _
    // Predicated region
    $region6: #{pallas_embed.1} parent=1 // pred_check
      _
    $region7: #{pallas_embed.1} parent=1 // pred_check_branch
      %11 = sbr.rel (0) target = $region9
    $region8: #{pallas_embed.1} parent=1 // pred_region
      %s13 = ssub.s32 1024, 1024
      %14 = vsyncadd [#allocation3], %s13
      %s15 = sshll.u32 [#allocation2], 4
      %s16 = int_to_ptr.vmem [resolvable:$true] %s15
      %21 = dma.hbm_to_vmem [thread:$0]  %s1, 1024, %s16, [#allocation3], 64, 64, 4
    $region9: #{pallas_embed.1} parent=1 // pred_fallthru
      _
    // Predicated region
    $region10: #{pallas_embed.1} parent=1 // pred_check
      _
    $region11: #{pallas_embed.1} parent=1 // pred_check_branch
      %23 = sbr.rel (0) target = $region13
    $region12: #{pallas_embed.1} parent=1 // pred_region
      %24 = dma.done [#allocation3], 1024
    $region13: #{pallas_embed.1} parent=1 // pred_fallthru
      _
    %v26 = vld [vmem:[%s0] sm:$0xff]
    %v27 = vlaneseq
    %v28 = vand.u32 %v27, 127
    %29 = vset.pattern.permute.xlu0 0
    %30 = vperm.xlu0 %29, %v26
    %v31 = vpop.permute.xlu0 %30
    %vm32 = vcmp.eq.s32.totalorder %v31, %v28
    %v33 = vsel %vm32, 1, 0
    %v34 = vcvt.s32.f32 %v33
    %v35 = vadd.f32 %v34, 0.0
    %36 = vset.pattern.permute.xlu0 1
    %37 = vperm.xlu0 %36, %v26
    %v38 = vpop.permute.xlu0 %37
    %vm39 = vcmp.eq.s32.totalorder %v38, %v28
    %v40 = vsel %vm39, 1, 0
    %v41 = vcvt.s32.f32 %v40
    %v42 = vadd.f32 %v35, %v41
    %43 = vset.pattern.permute.xlu0 2
    %44 = vperm.xlu0 %43, %v26
    %v45 = vpop.permute.xlu0 %44
    %vm46 = vcmp.eq.s32.totalorder %v45, %v28
    %v47 = vsel %vm46, 1, 0
    %v48 = vcvt.s32.f32 %v47
    %v49 = vadd.f32 %v42, %v48
    %50 = vset.pattern.permute.xlu0 3
    %51 = vperm.xlu0 %50, %v26
    %v52 = vpop.permute.xlu0 %51
    %vm53 = vcmp.eq.s32.totalorder %v52, %v28
    %v54 = vsel %vm53, 1, 0
    %v55 = vcvt.s32.f32 %v54
    %v56 = vadd.f32 %v49, %v55
    %57 = vset.pattern.permute.xlu0 4
    %58 = vperm.xlu0 %57, %v26
    %v59 = vpop.permute.xlu0 %58
    %vm60 = vcmp.eq.s32.totalorder %v59, %v28
    %v61 = vsel %vm60, 1, 0
    %v62 = vcvt.s32.f32 %v61
    %v63 = vadd.f32 %v56, %v62
    %64 = vset.pattern.permute.xlu0 5
    %65 = vperm.xlu0 %64, %v26
    %v66 = vpop.permute.xlu0 %65
    %vm67 = vcmp.eq.s32.totalorder %v66, %v28
    %v68 = vsel %vm67, 1, 0
    %v69 = vcvt.s32.f32 %v68
    %v70 = vadd.f32 %v63, %v69
    %71 = vset.pattern.permute.xlu0 6
    %72 = vperm.xlu0 %71, %v26
    %v73 = vpop.permute.xlu0 %72
    %vm74 = vcmp.eq.s32.totalorder %v73, %v28
    %v75 = vsel %vm74, 1, 0
    %v76 = vcvt.s32.f32 %v75
    %v77 = vadd.f32 %v70, %v76
    %78 = vset.pattern.permute.xlu0 7
    %79 = vperm.xlu0 %78, %v26
    %v80 = vpop.permute.xlu0 %79
    %vm81 = vcmp.eq.s32.totalorder %v80, %v28
    %v82 = vsel %vm81, 1, 0
    %v83 = vcvt.s32.f32 %v82
    %v84 = vadd.f32 %v77, %v83
    %v85 = vmul.f32 %v84, 0.125
    %v86 = vpack.c.bf16 %v85, %v85
    %v87 = vld [vmem:[#allocation2] sm:$0xf]
    %v88 = vld [vmem:[#allocation2 + $0x4] sm:$0xf]
    %v89 = vld [vmem:[#allocation2 + $0x8] sm:$0xf]
    %v90 = vld [vmem:[#allocation2 + $0xc] sm:$0xf]
    %v91 = vld [vmem:[#allocation2 + $0x10] sm:$0xf]
    %v92 = vld [vmem:[#allocation2 + $0x14] sm:$0xf]
    %v93 = vld [vmem:[#allocation2 + $0x18] sm:$0xf]
    %v94 = vld [vmem:[#allocation2 + $0x1c] sm:$0xf]
    %v95 = vld [vmem:[#allocation2 + $0x20] sm:$0xf]
    %v96 = vld [vmem:[#allocation2 + $0x24] sm:$0xf]
    %v97 = vld [vmem:[#allocation2 + $0x28] sm:$0xf]
    %v98 = vld [vmem:[#allocation2 + $0x2c] sm:$0xf]
    %v99 = vld [vmem:[#allocation2 + $0x30] sm:$0xf]
    %v100 = vld [vmem:[#allocation2 + $0x34] sm:$0xf]
    %v101 = vld [vmem:[#allocation2 + $0x38] sm:$0xf]
    %v102 = vld [vmem:[#allocation2 + $0x3c] sm:$0xf]
    %v119 = vunpack.c.l.b16 %v87
    %v120 = vunpack.c.l.b16 %v88
    %v121 = vunpack.c.l.b16 %v89
    %v122 = vunpack.c.l.b16 %v90
    %v123 = vunpack.c.l.b16 %v91
    %v124 = vunpack.c.l.b16 %v92
    %v125 = vunpack.c.l.b16 %v93
    %v126 = vunpack.c.l.b16 %v94
    %v127 = vunpack.c.l.b16 %v95
    %v128 = vunpack.c.l.b16 %v96
    %v129 = vunpack.c.l.b16 %v97
    %v130 = vunpack.c.l.b16 %v98
    %v131 = vunpack.c.l.b16 %v99
    %v132 = vunpack.c.l.b16 %v100
    %v133 = vunpack.c.l.b16 %v101
    %v134 = vunpack.c.l.b16 %v102
    %v135 = vpack.c.b16 %v120, %v119
    %v136 = vpack.c.b16 %v122, %v121
    %v137 = vpack.c.b16 %v124, %v123
    %v138 = vpack.c.b16 %v126, %v125
    %v139 = vpack.c.b16 %v128, %v127
    %v140 = vpack.c.b16 %v130, %v129
    %v141 = vpack.c.b16 %v132, %v131
    %v142 = vpack.c.b16 %v134, %v133
    %151 = vmatprep.subr.bf16.mxu0 0
    %152 = vmatpush1.bf16.msra.mxu0 %v135
    %153 = vmatprep.subr.bf16.mxu0 0
    %154 = vmatpush1.bf16.msra.mxu0 %v136
    %155 = vmatprep.subr.bf16.mxu0 0
    %156 = vmatpush1.bf16.msra.mxu0 %v137
    %157 = vmatprep.subr.bf16.mxu0 0
    %158 = vmatpush1.bf16.msra.mxu0 %v138
    %159 = vmatprep.subr.bf16.mxu0 0
    %160 = vmatpush1.bf16.msra.mxu0 %v139
    %161 = vmatprep.subr.bf16.mxu0 0
    %162 = vmatpush1.bf16.msra.mxu0 %v140
    %163 = vmatprep.subr.bf16.mxu0 0
    %164 = vmatpush1.bf16.msra.mxu0 %v141
    %165 = vmatprep.subr.bf16.mxu0 0
    %166 = vmatpush1.bf16.msra.mxu0 %v142
    %167 = vmatprep.subr.bf16.mxu0 0
    %168 = vmatpush1.bf16.msra.mxu0 0
    %169 = vmatprep.subr.bf16.mxu0 0
    %170 = vmatpush1.bf16.msra.mxu0 0
    %171 = vmatprep.subr.bf16.mxu0 0
    %172 = vmatpush1.bf16.msra.mxu0 0
    %173 = vmatprep.subr.bf16.mxu0 0
    %174 = vmatpush1.bf16.msra.mxu0 0
    %175 = vmatprep.subr.bf16.mxu0 0
    %176 = vmatpush1.bf16.msra.mxu0 0
    %177 = vmatprep.subr.bf16.mxu0 0
    %178 = vmatpush1.bf16.msra.mxu0 0
    %179 = vmatprep.subr.bf16.mxu0 0
    %180 = vmatpush1.bf16.msra.mxu0 0
    %181 = vmatprep.subr.bf16.mxu0 0
    %182 = vmatpush1.bf16.msra.mxu0 0
    %183 = vmatprep.mubr.bf16.mxu0 0
    %184 = vmatmul.mubr.bf16.gmra.mrb[0].mxu0 %v86
    %v185 = vpop.f32.mrb[0].mxu0
    %v186 = vadd.f32 0.0, %v185
    %v187 = vpop.f32.mrb[0].mxu0
    %v188 = vpop.f32.mrb[0].mxu0
    %v189 = vpop.f32.mrb[0].mxu0
    %190 = vdwg.mxu0
    %191 = vst [vmem:[%s2] sm:$0xff] %v186
    // Predicated region
    $region14: #{pallas_embed.1} parent=1 // pred_check
      _
    $region15: #{pallas_embed.1} parent=1 // pred_check_branch
      %193 = sbr.rel (0) target = $region17
    $region16: #{pallas_embed.1} parent=1 // pred_region
      _
    $region17: #{pallas_embed.1} parent=1 // pred_fallthru
      _
    // Predicated region
    $region18: #{pallas_embed.1} parent=1 // pred_check
      _
    $region19: #{pallas_embed.1} parent=1 // pred_check_branch
      %195 = sbr.rel (0) target = $region21
    $region20: #{pallas_embed.1} parent=1 // pred_region
      _
    $region21: #{pallas_embed.1} parent=1 // pred_fallthru
      _
    %196 = vsyncpa [#allocation3], 1

</llo_original>
